<compile_context>
chip_gen: v7x
topology: tpu7x:2x2x1
jax: 0.10.0
libtpu: 0.0.40
codegen_flags: <defaults>
</compile_context>

<pallas_src>
import jax
import jax.numpy as jnp
from jax import lax
from jax.experimental import pallas as pl
from jax.experimental.pallas import tpu as pltpu


def _agru_recurrence_kernel(p_ref, g_ref, ucat_ref, bu_ref, out_ref):
    """Sequential attention-GRU recurrence (single invocation, no grid).

    p_ref    : (S, B, 2H) f32  precomputed fact projections:
               [..., :H] = Wr f_t + bWr + bUr,  [..., H:] = W f_t + bW
    g_ref    : (S, B, 1)  f32  attention gates g_t
    ucat_ref : (H, 2H)    f32  [Ur | U]  (stored (in_features, out_features))
    bu_ref   : (1, H)     f32  bU (stays inside the r-gated term)
    out_ref  : (B, H)          final memory C_S
    """
    S, B, two_h = p_ref.shape
    H = two_h // 2
    bu = bu_ref[...]                                          # (1, H)

    def step(t, C):
        p_t = p_ref[t]                                        # (B, 2H)
        g = g_ref[t]                                          # (B, 1)
        # One fused recurrent matmul per step: C @ [Ur | U].
        cu = jnp.dot(C, ucat_ref[...],
                     preferred_element_type=jnp.float32)      # (B, 2H)
        # r = sigmoid(Wr f + bWr + Ur C + bUr)   (fact-side biases pre-folded)
        r = jax.nn.sigmoid(p_t[:, :H] + cu[:, :H])
        # h~ = tanh(W f + bW + r * (U C + bU))
        h_tilda = jnp.tanh(p_t[:, H:] + r * (cu[:, H:] + bu))
        # h = g * h~ + (1 - g) * C
        return g * h_tilda + (1.0 - g) * C

    C0 = jnp.zeros((B, H), jnp.float32)
    C = lax.fori_loop(0, S, step, C0, unroll=True)            # S static -> fully unrolled
    out_ref[...] = C.astype(out_ref.dtype)                    # single store at the end


@jax.jit
def attention_gru(facts, G, Wr, bWr, Ur, bUr, W, bW, U, bU):
    """facts: (B, S, H_in), G: (B, S). Weights stored (in_features, out_features)."""
    B, S, H_in = facts.shape
    H = Wr.shape[1]

    # Hoisted fact projection: one (B*S, H_in)@(H_in, 2H) matmul with the
    # non-gated biases folded in; einsum emits (S, B, 2H) directly (no explicit
    # facts transpose).  This is off the serial critical path.
    W_cat = jnp.concatenate([Wr, W], axis=1)                  # (H_in, 2H)
    b_cat = jnp.concatenate([bWr + bUr, bW], axis=1)          # (1, 2H)
    P = jnp.einsum("bsi,io->sbo", facts.astype(jnp.float32), W_cat) + b_cat
    U_cat = jnp.concatenate([Ur, U], axis=1)                  # (H, 2H)
    g_t = jnp.transpose(G, (1, 0))[:, :, None].astype(jnp.float32)  # (S, B, 1)

    vmem = pl.BlockSpec(memory_space=pltpu.MemorySpace.VMEM)
    return pl.pallas_call(
        _agru_recurrence_kernel,
        out_shape=jax.ShapeDtypeStruct((B, H), facts.dtype),
        in_specs=[vmem, vmem, vmem, vmem],
        out_specs=vmem,
    )(P, g_t, U_cat, bU)


def attention_gru_ref(facts, G, Wr, bWr, Ur, bUr, W, bW, U, bU):
    """Pure-JAX reference mirroring the PyTorch forward."""
    B, S, _ = facts.shape
    H = Wr.shape[1]
    C = jnp.zeros((B, H), jnp.float32)
    for sid in range(S):
        fact = facts[:, sid, :]
        g = G[:, sid][:, None]
        r = jax.nn.sigmoid(fact @ Wr + bWr + C @ Ur + bUr)
        h_tilda = jnp.tanh(fact @ W + bW + r * (C @ U + bU))
        C = g * h_tilda + (1.0 - g) * C
    return C


def _xavier_normal(key, fan_in, fan_out):
    std = (2.0 / (fan_in + fan_out)) ** 0.5
    # returned pre-transposed: (in_features, out_features)
    return std * jax.random.normal(key, (fan_in, fan_out), dtype=jnp.float32)


def _linear_bias(key, fan_in, fan_out):
    bound = 1.0 / (fan_in ** 0.5)  # PyTorch nn.Linear default bias init
    return jax.random.uniform(key, (1, fan_out), jnp.float32, -bound, bound)


if __name__ == "__main__":
    # #hidden == #embedding per the module docstring.
    B, S, H = 8, 8, 128
    INPUT = H

    key = jax.random.PRNGKey(0)
    keys = jax.random.split(key, 12)

    facts = jax.random.normal(keys[0], (B, S, INPUT), dtype=jnp.float32)
    G = jax.nn.softmax(jax.random.normal(keys[1], (B, S), dtype=jnp.float32), axis=-1)

    Wr = _xavier_normal(keys[2], INPUT, H)
    bWr = _linear_bias(keys[3], INPUT, H)
    Ur = _xavier_normal(keys[4], H, H)
    bUr = _linear_bias(keys[5], H, H)
    W = _xavier_normal(keys[6], INPUT, H)
    bW = _linear_bias(keys[7], INPUT, H)
    U = _xavier_normal(keys[8], H, H)
    bU = _linear_bias(keys[9], H, H)

    out = attention_gru(facts, G, Wr, bWr, Ur, bUr, W, bW, U, bU)
    out = jax.block_until_ready(out)

    ref = attention_gru_ref(facts, G, Wr, bWr, Ur, bUr, W, bW, U, bU)
    assert out.shape == (B, H)
    assert jnp.allclose(out, ref, atol=2e-5, rtol=2e-5), "mismatch vs reference"

    print("KERNEL_OK")
</pallas_src>

<mosaic_0001>
module attributes {stable_mosaic.version = 11 : i64} {
  func.func @_agru_recurrence_kernel(%arg0: memref<8x8x256xf32, #tpu.memory_space<vmem>>, %arg1: memref<8x8x1xf32, #tpu.memory_space<vmem>>, %arg2: memref<128x256xf32, #tpu.memory_space<vmem>>, %arg3: memref<1x128xf32, #tpu.memory_space<vmem>>, %arg4: memref<8x128xf32, #tpu.memory_space<vmem>>) attributes {dimension_semantics = [], scalar_prefetch = 0 : i64, scratch_operands = 0 : i64, tpu.core_type = #tpu.core_type<tc>} {
    %c0 = arith.constant 0 : index
    %c0_0 = arith.constant 0 : index
    %0 = vector.load %arg3[%c0, %c0_0] : memref<1x128xf32, #tpu.memory_space<vmem>>, vector<1x128xf32>
    %cst = arith.constant 0.000000e+00 : f32
    %1 = vector.broadcast %cst : f32 to vector<8x128xf32>
    %c0_i32 = arith.constant 0 : i32
    %2 = arith.index_cast %c0_i32 : i32 to index
    %c0_1 = arith.constant 0 : index
    %c0_2 = arith.constant 0 : index
    %3 = vector.load %arg0[%2, %c0_1, %c0_2] : memref<8x8x256xf32, #tpu.memory_space<vmem>>, vector<1x8x256xf32>
    %4 = vector.shape_cast %3 : vector<1x8x256xf32> to vector<8x256xf32>
    %5 = arith.index_cast %c0_i32 : i32 to index
    %c0_3 = arith.constant 0 : index
    %c0_4 = arith.constant 0 : index
    %6 = vector.load %arg1[%5, %c0_3, %c0_4] : memref<8x8x1xf32, #tpu.memory_space<vmem>>, vector<1x8x1xf32>
    %7 = vector.shape_cast %6 : vector<1x8x1xf32> to vector<8x1xf32>
    %c0_5 = arith.constant 0 : index
    %c0_6 = arith.constant 0 : index
    %8 = vector.load %arg2[%c0_5, %c0_6] : memref<128x256xf32, #tpu.memory_space<vmem>>, vector<128x256xf32>
    %cst_7 = arith.constant dense<0.000000e+00> : vector<8x256xf32>
    %9 = tpu.matmul %1, %8, %cst_7 {dimension_numbers = #tpu.dot_dimension_numbers<[1], [0], [0], [1], [0, 0, 1, 1], [], []>} : vector<8x128xf32>, vector<128x256xf32>, vector<8x256xf32> -> vector<8x256xf32>
    %10 = vector.extract_strided_slice %4 {offsets = [0, 0], sizes = [8, 128], strides = [1, 1]} : vector<8x256xf32> to vector<8x128xf32>
    %11 = vector.extract_strided_slice %9 {offsets = [0, 0], sizes = [8, 128], strides = [1, 1]} : vector<8x256xf32> to vector<8x128xf32>
    %12 = arith.addf %10, %11 : vector<8x128xf32>
    %13 = arith.negf %12 : vector<8x128xf32>
    %14 = math.exp %13 : vector<8x128xf32>
    %cst_8 = arith.constant 1.000000e+00 : f32
    %15 = vector.broadcast %cst_8 : f32 to vector<8x128xf32>
    %16 = arith.addf %15, %14 : vector<8x128xf32>
    %17 = arith.divf %15, %16 : vector<8x128xf32>
    %18 = vector.extract_strided_slice %4 {offsets = [0, 128], sizes = [8, 128], strides = [1, 1]} : vector<8x256xf32> to vector<8x128xf32>
    %19 = vector.extract_strided_slice %9 {offsets = [0, 128], sizes = [8, 128], strides = [1, 1]} : vector<8x256xf32> to vector<8x128xf32>
    %20 = vector.broadcast %0 : vector<1x128xf32> to vector<8x128xf32>
    %21 = arith.addf %19, %20 : vector<8x128xf32>
    %22 = arith.mulf %17, %21 : vector<8x128xf32>
    %23 = arith.addf %18, %22 : vector<8x128xf32>
    %24 = math.tanh %23 : vector<8x128xf32>
    %25 = vector.broadcast %7 : vector<8x1xf32> to vector<8x128xf32>
    %26 = arith.mulf %25, %24 : vector<8x128xf32>
    %cst_9 = arith.constant 1.000000e+00 : f32
    %27 = vector.broadcast %cst_9 : f32 to vector<8x1xf32>
    %28 = arith.subf %27, %7 : vector<8x1xf32>
    %29 = vector.broadcast %28 : vector<8x1xf32> to vector<8x128xf32>
    %30 = arith.mulf %29, %1 : vector<8x128xf32>
    %31 = arith.addf %26, %30 : vector<8x128xf32>
    %c1_i32 = arith.constant 1 : i32
    %32 = arith.index_cast %c1_i32 : i32 to index
    %c0_10 = arith.constant 0 : index
    %c0_11 = arith.constant 0 : index
    %33 = vector.load %arg0[%32, %c0_10, %c0_11] : memref<8x8x256xf32, #tpu.memory_space<vmem>>, vector<1x8x256xf32>
    %34 = vector.shape_cast %33 : vector<1x8x256xf32> to vector<8x256xf32>
    %35 = arith.index_cast %c1_i32 : i32 to index
    %c0_12 = arith.constant 0 : index
    %c0_13 = arith.constant 0 : index
    %36 = vector.load %arg1[%35, %c0_12, %c0_13] : memref<8x8x1xf32, #tpu.memory_space<vmem>>, vector<1x8x1xf32>
    %37 = vector.shape_cast %36 : vector<1x8x1xf32> to vector<8x1xf32>
    %c0_14 = arith.constant 0 : index
    %c0_15 = arith.constant 0 : index
    %38 = vector.load %arg2[%c0_14, %c0_15] : memref<128x256xf32, #tpu.memory_space<vmem>>, vector<128x256xf32>
    %cst_16 = arith.constant dense<0.000000e+00> : vector<8x256xf32>
    %39 = tpu.matmul %31, %38, %cst_16 {dimension_numbers = #tpu.dot_dimension_numbers<[1], [0], [0], [1], [0, 0, 1, 1], [], []>} : vector<8x128xf32>, vector<128x256xf32>, vector<8x256xf32> -> vector<8x256xf32>
    %40 = vector.extract_strided_slice %34 {offsets = [0, 0], sizes = [8, 128], strides = [1, 1]} : vector<8x256xf32> to vector<8x128xf32>
    %41 = vector.extract_strided_slice %39 {offsets = [0, 0], sizes = [8, 128], strides = [1, 1]} : vector<8x256xf32> to vector<8x128xf32>
    %42 = arith.addf %40, %41 : vector<8x128xf32>
    %43 = arith.negf %42 : vector<8x128xf32>
    %44 = math.exp %43 : vector<8x128xf32>
    %cst_17 = arith.constant 1.000000e+00 : f32
    %45 = vector.broadcast %cst_17 : f32 to vector<8x128xf32>
    %46 = arith.addf %45, %44 : vector<8x128xf32>
    %47 = arith.divf %45, %46 : vector<8x128xf32>
    %48 = vector.extract_strided_slice %34 {offsets = [0, 128], sizes = [8, 128], strides = [1, 1]} : vector<8x256xf32> to vector<8x128xf32>
    %49 = vector.extract_strided_slice %39 {offsets = [0, 128], sizes = [8, 128], strides = [1, 1]} : vector<8x256xf32> to vector<8x128xf32>
    %50 = vector.broadcast %0 : vector<1x128xf32> to vector<8x128xf32>
    %51 = arith.addf %49, %50 : vector<8x128xf32>
    %52 = arith.mulf %47, %51 : vector<8x128xf32>
    %53 = arith.addf %48, %52 : vector<8x128xf32>
    %54 = math.tanh %53 : vector<8x128xf32>
    %55 = vector.broadcast %37 : vector<8x1xf32> to vector<8x128xf32>
    %56 = arith.mulf %55, %54 : vector<8x128xf32>
    %cst_18 = arith.constant 1.000000e+00 : f32
    %57 = vector.broadcast %cst_18 : f32 to vector<8x1xf32>
    %58 = arith.subf %57, %37 : vector<8x1xf32>
    %59 = vector.broadcast %58 : vector<8x1xf32> to vector<8x128xf32>
    %60 = arith.mulf %59, %31 : vector<8x128xf32>
    %61 = arith.addf %56, %60 : vector<8x128xf32>
    %c2_i32 = arith.constant 2 : i32
    %62 = arith.index_cast %c2_i32 : i32 to index
    %c0_19 = arith.constant 0 : index
    %c0_20 = arith.constant 0 : index
    %63 = vector.load %arg0[%62, %c0_19, %c0_20] : memref<8x8x256xf32, #tpu.memory_space<vmem>>, vector<1x8x256xf32>
    %64 = vector.shape_cast %63 : vector<1x8x256xf32> to vector<8x256xf32>
    %65 = arith.index_cast %c2_i32 : i32 to index
    %c0_21 = arith.constant 0 : index
    %c0_22 = arith.constant 0 : index
    %66 = vector.load %arg1[%65, %c0_21, %c0_22] : memref<8x8x1xf32, #tpu.memory_space<vmem>>, vector<1x8x1xf32>
    %67 = vector.shape_cast %66 : vector<1x8x1xf32> to vector<8x1xf32>
    %c0_23 = arith.constant 0 : index
    %c0_24 = arith.constant 0 : index
    %68 = vector.load %arg2[%c0_23, %c0_24] : memref<128x256xf32, #tpu.memory_space<vmem>>, vector<128x256xf32>
    %cst_25 = arith.constant dense<0.000000e+00> : vector<8x256xf32>
    %69 = tpu.matmul %61, %68, %cst_25 {dimension_numbers = #tpu.dot_dimension_numbers<[1], [0], [0], [1], [0, 0, 1, 1], [], []>} : vector<8x128xf32>, vector<128x256xf32>, vector<8x256xf32> -> vector<8x256xf32>
    %70 = vector.extract_strided_slice %64 {offsets = [0, 0], sizes = [8, 128], strides = [1, 1]} : vector<8x256xf32> to vector<8x128xf32>
    %71 = vector.extract_strided_slice %69 {offsets = [0, 0], sizes = [8, 128], strides = [1, 1]} : vector<8x256xf32> to vector<8x128xf32>
    %72 = arith.addf %70, %71 : vector<8x128xf32>
    %73 = arith.negf %72 : vector<8x128xf32>
    %74 = math.exp %73 : vector<8x128xf32>
    %cst_26 = arith.constant 1.000000e+00 : f32
    %75 = vector.broadcast %cst_26 : f32 to vector<8x128xf32>
    %76 = arith.addf %75, %74 : vector<8x128xf32>
    %77 = arith.divf %75, %76 : vector<8x128xf32>
    %78 = vector.extract_strided_slice %64 {offsets = [0, 128], sizes = [8, 128], strides = [1, 1]} : vector<8x256xf32> to vector<8x128xf32>
    %79 = vector.extract_strided_slice %69 {offsets = [0, 128], sizes = [8, 128], strides = [1, 1]} : vector<8x256xf32> to vector<8x128xf32>
    %80 = vector.broadcast %0 : vector<1x128xf32> to vector<8x128xf32>
    %81 = arith.addf %79, %80 : vector<8x128xf32>
    %82 = arith.mulf %77, %81 : vector<8x128xf32>
    %83 = arith.addf %78, %82 : vector<8x128xf32>
    %84 = math.tanh %83 : vector<8x128xf32>
    %85 = vector.broadcast %67 : vector<8x1xf32> to vector<8x128xf32>
    %86 = arith.mulf %85, %84 : vector<8x128xf32>
    %cst_27 = arith.constant 1.000000e+00 : f32
    %87 = vector.broadcast %cst_27 : f32 to vector<8x1xf32>
    %88 = arith.subf %87, %67 : vector<8x1xf32>
    %89 = vector.broadcast %88 : vector<8x1xf32> to vector<8x128xf32>
    %90 = arith.mulf %89, %61 : vector<8x128xf32>
    %91 = arith.addf %86, %90 : vector<8x128xf32>
    %c3_i32 = arith.constant 3 : i32
    %92 = arith.index_cast %c3_i32 : i32 to index
    %c0_28 = arith.constant 0 : index
    %c0_29 = arith.constant 0 : index
    %93 = vector.load %arg0[%92, %c0_28, %c0_29] : memref<8x8x256xf32, #tpu.memory_space<vmem>>, vector<1x8x256xf32>
    %94 = vector.shape_cast %93 : vector<1x8x256xf32> to vector<8x256xf32>
    %95 = arith.index_cast %c3_i32 : i32 to index
    %c0_30 = arith.constant 0 : index
    %c0_31 = arith.constant 0 : index
    %96 = vector.load %arg1[%95, %c0_30, %c0_31] : memref<8x8x1xf32, #tpu.memory_space<vmem>>, vector<1x8x1xf32>
    %97 = vector.shape_cast %96 : vector<1x8x1xf32> to vector<8x1xf32>
    %c0_32 = arith.constant 0 : index
    %c0_33 = arith.constant 0 : index
    %98 = vector.load %arg2[%c0_32, %c0_33] : memref<128x256xf32, #tpu.memory_space<vmem>>, vector<128x256xf32>
    %cst_34 = arith.constant dense<0.000000e+00> : vector<8x256xf32>
    %99 = tpu.matmul %91, %98, %cst_34 {dimension_numbers = #tpu.dot_dimension_numbers<[1], [0], [0], [1], [0, 0, 1, 1], [], []>} : vector<8x128xf32>, vector<128x256xf32>, vector<8x256xf32> -> vector<8x256xf32>
    %100 = vector.extract_strided_slice %94 {offsets = [0, 0], sizes = [8, 128], strides = [1, 1]} : vector<8x256xf32> to vector<8x128xf32>
    %101 = vector.extract_strided_slice %99 {offsets = [0, 0], sizes = [8, 128], strides = [1, 1]} : vector<8x256xf32> to vector<8x128xf32>
    %102 = arith.addf %100, %101 : vector<8x128xf32>
    %103 = arith.negf %102 : vector<8x128xf32>
    %104 = math.exp %103 : vector<8x128xf32>
    %cst_35 = arith.constant 1.000000e+00 : f32
    %105 = vector.broadcast %cst_35 : f32 to vector<8x128xf32>
    %106 = arith.addf %105, %104 : vector<8x128xf32>
    %107 = arith.divf %105, %106 : vector<8x128xf32>
    %108 = vector.extract_strided_slice %94 {offsets = [0, 128], sizes = [8, 128], strides = [1, 1]} : vector<8x256xf32> to vector<8x128xf32>
    %109 = vector.extract_strided_slice %99 {offsets = [0, 128], sizes = [8, 128], strides = [1, 1]} : vector<8x256xf32> to vector<8x128xf32>
    %110 = vector.broadcast %0 : vector<1x128xf32> to vector<8x128xf32>
    %111 = arith.addf %109, %110 : vector<8x128xf32>
    %112 = arith.mulf %107, %111 : vector<8x128xf32>
    %113 = arith.addf %108, %112 : vector<8x128xf32>
    %114 = math.tanh %113 : vector<8x128xf32>
    %115 = vector.broadcast %97 : vector<8x1xf32> to vector<8x128xf32>
    %116 = arith.mulf %115, %114 : vector<8x128xf32>
    %cst_36 = arith.constant 1.000000e+00 : f32
    %117 = vector.broadcast %cst_36 : f32 to vector<8x1xf32>
    %118 = arith.subf %117, %97 : vector<8x1xf32>
    %119 = vector.broadcast %118 : vector<8x1xf32> to vector<8x128xf32>
    %120 = arith.mulf %119, %91 : vector<8x128xf32>
    %121 = arith.addf %116, %120 : vector<8x128xf32>
    %c4_i32 = arith.constant 4 : i32
    %122 = arith.index_cast %c4_i32 : i32 to index
    %c0_37 = arith.constant 0 : index
    %c0_38 = arith.constant 0 : index
    %123 = vector.load %arg0[%122, %c0_37, %c0_38] : memref<8x8x256xf32, #tpu.memory_space<vmem>>, vector<1x8x256xf32>
    %124 = vector.shape_cast %123 : vector<1x8x256xf32> to vector<8x256xf32>
    %125 = arith.index_cast %c4_i32 : i32 to index
    %c0_39 = arith.constant 0 : index
    %c0_40 = arith.constant 0 : index
    %126 = vector.load %arg1[%125, %c0_39, %c0_40] : memref<8x8x1xf32, #tpu.memory_space<vmem>>, vector<1x8x1xf32>
    %127 = vector.shape_cast %126 : vector<1x8x1xf32> to vector<8x1xf32>
    %c0_41 = arith.constant 0 : index
    %c0_42 = arith.constant 0 : index
    %128 = vector.load %arg2[%c0_41, %c0_42] : memref<128x256xf32, #tpu.memory_space<vmem>>, vector<128x256xf32>
    %cst_43 = arith.constant dense<0.000000e+00> : vector<8x256xf32>
    %129 = tpu.matmul %121, %128, %cst_43 {dimension_numbers = #tpu.dot_dimension_numbers<[1], [0], [0], [1], [0, 0, 1, 1], [], []>} : vector<8x128xf32>, vector<128x256xf32>, vector<8x256xf32> -> vector<8x256xf32>
    %130 = vector.extract_strided_slice %124 {offsets = [0, 0], sizes = [8, 128], strides = [1, 1]} : vector<8x256xf32> to vector<8x128xf32>
    %131 = vector.extract_strided_slice %129 {offsets = [0, 0], sizes = [8, 128], strides = [1, 1]} : vector<8x256xf32> to vector<8x128xf32>
    %132 = arith.addf %130, %131 : vector<8x128xf32>
    %133 = arith.negf %132 : vector<8x128xf32>
    %134 = math.exp %133 : vector<8x128xf32>
    %cst_44 = arith.constant 1.000000e+00 : f32
    %135 = vector.broadcast %cst_44 : f32 to vector<8x128xf32>
    %136 = arith.addf %135, %134 : vector<8x128xf32>
    %137 = arith.divf %135, %136 : vector<8x128xf32>
    %138 = vector.extract_strided_slice %124 {offsets = [0, 128], sizes = [8, 128], strides = [1, 1]} : vector<8x256xf32> to vector<8x128xf32>
    %139 = vector.extract_strided_slice %129 {offsets = [0, 128], sizes = [8, 128], strides = [1, 1]} : vector<8x256xf32> to vector<8x128xf32>
    %140 = vector.broadcast %0 : vector<1x128xf32> to vector<8x128xf32>
    %141 = arith.addf %139, %140 : vector<8x128xf32>
    %142 = arith.mulf %137, %141 : vector<8x128xf32>
    %143 = arith.addf %138, %142 : vector<8x128xf32>
    %144 = math.tanh %143 : vector<8x128xf32>
    %145 = vector.broadcast %127 : vector<8x1xf32> to vector<8x128xf32>
    %146 = arith.mulf %145, %144 : vector<8x128xf32>
    %cst_45 = arith.constant 1.000000e+00 : f32
    %147 = vector.broadcast %cst_45 : f32 to vector<8x1xf32>
    %148 = arith.subf %147, %127 : vector<8x1xf32>
    %149 = vector.broadcast %148 : vector<8x1xf32> to vector<8x128xf32>
    %150 = arith.mulf %149, %121 : vector<8x128xf32>
    %151 = arith.addf %146, %150 : vector<8x128xf32>
    %c5_i32 = arith.constant 5 : i32
    %152 = arith.index_cast %c5_i32 : i32 to index
    %c0_46 = arith.constant 0 : index
    %c0_47 = arith.constant 0 : index
    %153 = vector.load %arg0[%152, %c0_46, %c0_47] : memref<8x8x256xf32, #tpu.memory_space<vmem>>, vector<1x8x256xf32>
    %154 = vector.shape_cast %153 : vector<1x8x256xf32> to vector<8x256xf32>
    %155 = arith.index_cast %c5_i32 : i32 to index
    %c0_48 = arith.constant 0 : index
    %c0_49 = arith.constant 0 : index
    %156 = vector.load %arg1[%155, %c0_48, %c0_49] : memref<8x8x1xf32, #tpu.memory_space<vmem>>, vector<1x8x1xf32>
    %157 = vector.shape_cast %156 : vector<1x8x1xf32> to vector<8x1xf32>
    %c0_50 = arith.constant 0 : index
    %c0_51 = arith.constant 0 : index
    %158 = vector.load %arg2[%c0_50, %c0_51] : memref<128x256xf32, #tpu.memory_space<vmem>>, vector<128x256xf32>
    %cst_52 = arith.constant dense<0.000000e+00> : vector<8x256xf32>
    %159 = tpu.matmul %151, %158, %cst_52 {dimension_numbers = #tpu.dot_dimension_numbers<[1], [0], [0], [1], [0, 0, 1, 1], [], []>} : vector<8x128xf32>, vector<128x256xf32>, vector<8x256xf32> -> vector<8x256xf32>
    %160 = vector.extract_strided_slice %154 {offsets = [0, 0], sizes = [8, 128], strides = [1, 1]} : vector<8x256xf32> to vector<8x128xf32>
    %161 = vector.extract_strided_slice %159 {offsets = [0, 0], sizes = [8, 128], strides = [1, 1]} : vector<8x256xf32> to vector<8x128xf32>
    %162 = arith.addf %160, %161 : vector<8x128xf32>
    %163 = arith.negf %162 : vector<8x128xf32>
    %164 = math.exp %163 : vector<8x128xf32>
    %cst_53 = arith.constant 1.000000e+00 : f32
    %165 = vector.broadcast %cst_53 : f32 to vector<8x128xf32>
    %166 = arith.addf %165, %164 : vector<8x128xf32>
    %167 = arith.divf %165, %166 : vector<8x128xf32>
    %168 = vector.extract_strided_slice %154 {offsets = [0, 128], sizes = [8, 128], strides = [1, 1]} : vector<8x256xf32> to vector<8x128xf32>
    %169 = vector.extract_strided_slice %159 {offsets = [0, 128], sizes = [8, 128], strides = [1, 1]} : vector<8x256xf32> to vector<8x128xf32>
    %170 = vector.broadcast %0 : vector<1x128xf32> to vector<8x128xf32>
    %171 = arith.addf %169, %170 : vector<8x128xf32>
    %172 = arith.mulf %167, %171 : vector<8x128xf32>
    %173 = arith.addf %168, %172 : vector<8x128xf32>
    %174 = math.tanh %173 : vector<8x128xf32>
    %175 = vector.broadcast %157 : vector<8x1xf32> to vector<8x128xf32>
    %176 = arith.mulf %175, %174 : vector<8x128xf32>
    %cst_54 = arith.constant 1.000000e+00 : f32
    %177 = vector.broadcast %cst_54 : f32 to vector<8x1xf32>
    %178 = arith.subf %177, %157 : vector<8x1xf32>
    %179 = vector.broadcast %178 : vector<8x1xf32> to vector<8x128xf32>
    %180 = arith.mulf %179, %151 : vector<8x128xf32>
    %181 = arith.addf %176, %180 : vector<8x128xf32>
    %c6_i32 = arith.constant 6 : i32
    %182 = arith.index_cast %c6_i32 : i32 to index
    %c0_55 = arith.constant 0 : index
    %c0_56 = arith.constant 0 : index
    %183 = vector.load %arg0[%182, %c0_55, %c0_56] : memref<8x8x256xf32, #tpu.memory_space<vmem>>, vector<1x8x256xf32>
    %184 = vector.shape_cast %183 : vector<1x8x256xf32> to vector<8x256xf32>
    %185 = arith.index_cast %c6_i32 : i32 to index
    %c0_57 = arith.constant 0 : index
    %c0_58 = arith.constant 0 : index
    %186 = vector.load %arg1[%185, %c0_57, %c0_58] : memref<8x8x1xf32, #tpu.memory_space<vmem>>, vector<1x8x1xf32>
    %187 = vector.shape_cast %186 : vector<1x8x1xf32> to vector<8x1xf32>
    %c0_59 = arith.constant 0 : index
    %c0_60 = arith.constant 0 : index
    %188 = vector.load %arg2[%c0_59, %c0_60] : memref<128x256xf32, #tpu.memory_space<vmem>>, vector<128x256xf32>
    %cst_61 = arith.constant dense<0.000000e+00> : vector<8x256xf32>
    %189 = tpu.matmul %181, %188, %cst_61 {dimension_numbers = #tpu.dot_dimension_numbers<[1], [0], [0], [1], [0, 0, 1, 1], [], []>} : vector<8x128xf32>, vector<128x256xf32>, vector<8x256xf32> -> vector<8x256xf32>
    %190 = vector.extract_strided_slice %184 {offsets = [0, 0], sizes = [8, 128], strides = [1, 1]} : vector<8x256xf32> to vector<8x128xf32>
    %191 = vector.extract_strided_slice %189 {offsets = [0, 0], sizes = [8, 128], strides = [1, 1]} : vector<8x256xf32> to vector<8x128xf32>
    %192 = arith.addf %190, %191 : vector<8x128xf32>
    %193 = arith.negf %192 : vector<8x128xf32>
    %194 = math.exp %193 : vector<8x128xf32>
    %cst_62 = arith.constant 1.000000e+00 : f32
    %195 = vector.broadcast %cst_62 : f32 to vector<8x128xf32>
    %196 = arith.addf %195, %194 : vector<8x128xf32>
    %197 = arith.divf %195, %196 : vector<8x128xf32>
    %198 = vector.extract_strided_slice %184 {offsets = [0, 128], sizes = [8, 128], strides = [1, 1]} : vector<8x256xf32> to vector<8x128xf32>
    %199 = vector.extract_strided_slice %189 {offsets = [0, 128], sizes = [8, 128], strides = [1, 1]} : vector<8x256xf32> to vector<8x128xf32>
    %200 = vector.broadcast %0 : vector<1x128xf32> to vector<8x128xf32>
    %201 = arith.addf %199, %200 : vector<8x128xf32>
    %202 = arith.mulf %197, %201 : vector<8x128xf32>
    %203 = arith.addf %198, %202 : vector<8x128xf32>
    %204 = math.tanh %203 : vector<8x128xf32>
    %205 = vector.broadcast %187 : vector<8x1xf32> to vector<8x128xf32>
    %206 = arith.mulf %205, %204 : vector<8x128xf32>
    %cst_63 = arith.constant 1.000000e+00 : f32
    %207 = vector.broadcast %cst_63 : f32 to vector<8x1xf32>
    %208 = arith.subf %207, %187 : vector<8x1xf32>
    %209 = vector.broadcast %208 : vector<8x1xf32> to vector<8x128xf32>
    %210 = arith.mulf %209, %181 : vector<8x128xf32>
    %211 = arith.addf %206, %210 : vector<8x128xf32>
    %c7_i32 = arith.constant 7 : i32
    %212 = arith.index_cast %c7_i32 : i32 to index
    %c0_64 = arith.constant 0 : index
    %c0_65 = arith.constant 0 : index
    %213 = vector.load %arg0[%212, %c0_64, %c0_65] : memref<8x8x256xf32, #tpu.memory_space<vmem>>, vector<1x8x256xf32>
    %214 = vector.shape_cast %213 : vector<1x8x256xf32> to vector<8x256xf32>
    %215 = arith.index_cast %c7_i32 : i32 to index
    %c0_66 = arith.constant 0 : index
    %c0_67 = arith.constant 0 : index
    %216 = vector.load %arg1[%215, %c0_66, %c0_67] : memref<8x8x1xf32, #tpu.memory_space<vmem>>, vector<1x8x1xf32>
    %217 = vector.shape_cast %216 : vector<1x8x1xf32> to vector<8x1xf32>
    %c0_68 = arith.constant 0 : index
    %c0_69 = arith.constant 0 : index
    %218 = vector.load %arg2[%c0_68, %c0_69] : memref<128x256xf32, #tpu.memory_space<vmem>>, vector<128x256xf32>
    %cst_70 = arith.constant dense<0.000000e+00> : vector<8x256xf32>
    %219 = tpu.matmul %211, %218, %cst_70 {dimension_numbers = #tpu.dot_dimension_numbers<[1], [0], [0], [1], [0, 0, 1, 1], [], []>} : vector<8x128xf32>, vector<128x256xf32>, vector<8x256xf32> -> vector<8x256xf32>
    %220 = vector.extract_strided_slice %214 {offsets = [0, 0], sizes = [8, 128], strides = [1, 1]} : vector<8x256xf32> to vector<8x128xf32>
    %221 = vector.extract_strided_slice %219 {offsets = [0, 0], sizes = [8, 128], strides = [1, 1]} : vector<8x256xf32> to vector<8x128xf32>
    %222 = arith.addf %220, %221 : vector<8x128xf32>
    %223 = arith.negf %222 : vector<8x128xf32>
    %224 = math.exp %223 : vector<8x128xf32>
    %cst_71 = arith.constant 1.000000e+00 : f32
    %225 = vector.broadcast %cst_71 : f32 to vector<8x128xf32>
    %226 = arith.addf %225, %224 : vector<8x128xf32>
    %227 = arith.divf %225, %226 : vector<8x128xf32>
    %228 = vector.extract_strided_slice %214 {offsets = [0, 128], sizes = [8, 128], strides = [1, 1]} : vector<8x256xf32> to vector<8x128xf32>
    %229 = vector.extract_strided_slice %219 {offsets = [0, 128], sizes = [8, 128], strides = [1, 1]} : vector<8x256xf32> to vector<8x128xf32>
    %230 = vector.broadcast %0 : vector<1x128xf32> to vector<8x128xf32>
    %231 = arith.addf %229, %230 : vector<8x128xf32>
    %232 = arith.mulf %227, %231 : vector<8x128xf32>
    %233 = arith.addf %228, %232 : vector<8x128xf32>
    %234 = math.tanh %233 : vector<8x128xf32>
    %235 = vector.broadcast %217 : vector<8x1xf32> to vector<8x128xf32>
    %236 = arith.mulf %235, %234 : vector<8x128xf32>
    %cst_72 = arith.constant 1.000000e+00 : f32
    %237 = vector.broadcast %cst_72 : f32 to vector<8x1xf32>
    %238 = arith.subf %237, %217 : vector<8x1xf32>
    %239 = vector.broadcast %238 : vector<8x1xf32> to vector<8x128xf32>
    %240 = arith.mulf %239, %211 : vector<8x128xf32>
    %241 = arith.addf %236, %240 : vector<8x128xf32>
    %c8_i32 = arith.constant 8 : i32
    %c0_73 = arith.constant 0 : index
    %c0_74 = arith.constant 0 : index
    %242 = vector.load %arg4[%c0_73, %c0_74] : memref<8x128xf32, #tpu.memory_space<vmem>>, vector<8x128xf32>
    tpu.vector_store %arg4[%c0_73, %c0_74], %241 {strides = array<i32>} : memref<8x128xf32, #tpu.memory_space<vmem>>, vector<8x128xf32>,
    return
  }
}

</mosaic_0001>

<llo_original>
// kernel: attention_gru.1
$region0: #{attention_gru.1}
  #allocation0 [shape = 'u32[]', space=smem, size = 0x4, offset = 0x4, fixed_abs, tag = 'smem constant byte address 0x4 - core index']
  #allocation1 [shape = 'u32[144,128]{1,0:T(1,128)}', space=vmem, size = 0x12000, scoped, tag = 'internal scratch']
  %s0 = inlined_call_operand.vmem [shape: f32[8,8,256], index: 0, kind: input, shape index: {}]
  %s1 = inlined_call_operand.vmem [shape: f32[8,8,1], index: 1, kind: input, shape index: {}]
  %s2 = inlined_call_operand.vmem [shape: f32[128,256], index: 2, kind: input, shape index: {}]
  %s3 = inlined_call_operand.vmem [shape: f32[1,128], index: 3, kind: input, shape index: {}]
  %s4 = inlined_call_operand.hbm [shape: f32[8,128], index: 4, kind: output, shape index: {}]
  %s5 = sld [smem:[#allocation0]]
  $region26: #{attention_gru.1} parent=0
    _
  %s7 = ssub.s32 1, %s5
  %s8 = scalar_select 0, %s7, %s5
  $region1: #{attention_gru.1} parent=0
    #allocation2 [shape = 'u8[4096]{0}', space=vmem, size = 0x1000, scoped, tag = 'output window, operand 0, single buffered']
    #allocation3 [shape = 's32[1]{0}', space=sflag, size = 0x4, scoped, tag = 'scoped memory for attention_gru.1']
    %9 = vsyncpa [#allocation3], 0
    // Predicated region
    $region2: #{attention_gru.1} parent=1 // pred_check
      _
    $region3: #{attention_gru.1} parent=1 // pred_check_branch
      %11 = sbr.rel (0) target = $region5
    $region4: #{attention_gru.1} parent=1 // pred_region
      _
    $region5: #{attention_gru.1} parent=1 // pred_fallthru
      _
    // Predicated region
    $region6: #{attention_gru.1} parent=1 // pred_check
      _
    $region7: #{attention_gru.1} parent=1 // pred_check_branch
      %13 = sbr.rel (0) target = $region9
    $region8: #{attention_gru.1} parent=1 // pred_region
      _
    $region9: #{attention_gru.1} parent=1 // pred_fallthru
      _
    // Predicated region
    $region10: #{attention_gru.1} parent=1 // pred_check
      _
    $region11: #{attention_gru.1} parent=1 // pred_check_branch
      %15 = sbr.rel (0) target = $region13
    $region12: #{attention_gru.1} parent=1 // pred_region
      _
    $region13: #{attention_gru.1} parent=1 // pred_fallthru
      _
    // Predicated region
    $region14: #{attention_gru.1} parent=1 // pred_check
      _
    $region15: #{attention_gru.1} parent=1 // pred_check_branch
      %17 = sbr.rel (0) target = $region17
    $region16: #{attention_gru.1} parent=1 // pred_region
      _
    $region17: #{attention_gru.1} parent=1 // pred_fallthru
      _
    %v18 = vld [vmem:[%s3] sm:$0x1]
    %v19 = vld [vmem:[%s0] sm:$0xff]
    %v20 = vld [vmem:[%s0 + $0x8] sm:$0xff]
    %v21 = vld [vmem:[%s1] sm:$0xff]
    %v22 = vld [vmem:[%s2] sm:$0xff]
    %v23 = vld [vmem:[%s2 + $0x8] sm:$0xff]
    %v24 = vld [vmem:[%s2 + $0x10] sm:$0xff]
    %v25 = vld [vmem:[%s2 + $0x18] sm:$0xff]
    %v26 = vld [vmem:[%s2 + $0x20] sm:$0xff]
    %v27 = vld [vmem:[%s2 + $0x28] sm:$0xff]
    %v28 = vld [vmem:[%s2 + $0x30] sm:$0xff]
    %v29 = vld [vmem:[%s2 + $0x38] sm:$0xff]
    %v30 = vld [vmem:[%s2 + $0x40] sm:$0xff]
    %v31 = vld [vmem:[%s2 + $0x48] sm:$0xff]
    %v32 = vld [vmem:[%s2 + $0x50] sm:$0xff]
    %v33 = vld [vmem:[%s2 + $0x58] sm:$0xff]
    %v34 = vld [vmem:[%s2 + $0x60] sm:$0xff]
    %v35 = vld [vmem:[%s2 + $0x68] sm:$0xff]
    %v36 = vld [vmem:[%s2 + $0x70] sm:$0xff]
    %v37 = vld [vmem:[%s2 + $0x78] sm:$0xff]
    %v38 = vld [vmem:[%s2 + $0x80] sm:$0xff]
    %v39 = vld [vmem:[%s2 + $0x88] sm:$0xff]
    %v40 = vld [vmem:[%s2 + $0x90] sm:$0xff]
    %v41 = vld [vmem:[%s2 + $0x98] sm:$0xff]
    %v42 = vld [vmem:[%s2 + $0xa0] sm:$0xff]
    %v43 = vld [vmem:[%s2 + $0xa8] sm:$0xff]
    %v44 = vld [vmem:[%s2 + $0xb0] sm:$0xff]
    %v45 = vld [vmem:[%s2 + $0xb8] sm:$0xff]
    %v46 = vld [vmem:[%s2 + $0xc0] sm:$0xff]
    %v47 = vld [vmem:[%s2 + $0xc8] sm:$0xff]
    %v48 = vld [vmem:[%s2 + $0xd0] sm:$0xff]
    %v49 = vld [vmem:[%s2 + $0xd8] sm:$0xff]
    %v50 = vld [vmem:[%s2 + $0xe0] sm:$0xff]
    %v51 = vld [vmem:[%s2 + $0xe8] sm:$0xff]
    %v52 = vld [vmem:[%s2 + $0xf0] sm:$0xff]
    %v53 = vld [vmem:[%s2 + $0xf8] sm:$0xff]
    %54 = vmatprep.subr.mxu0 %v23
    %55 = vmatpush1.msra.mxu0 %v22
    %56 = vmatprep.subr.mxu0 %v25
    %57 = vmatpush1.msra.mxu0 %v24
    %58 = vmatprep.subr.mxu0 %v27
    %59 = vmatpush1.msra.mxu0 %v26
    %60 = vmatprep.subr.mxu0 %v29
    %61 = vmatpush1.msra.mxu0 %v28
    %62 = vmatprep.subr.mxu0 %v31
    %63 = vmatpush1.msra.mxu0 %v30
    %64 = vmatprep.subr.mxu0 %v33
    %65 = vmatpush1.msra.mxu0 %v32
    %66 = vmatprep.subr.mxu0 %v35
    %67 = vmatpush1.msra.mxu0 %v34
    %68 = vmatprep.subr.mxu0 %v37
    %69 = vmatpush1.msra.mxu0 %v36
    %70 = vmatprep.subr.mxu0 %v39
    %71 = vmatpush1.msra.mxu0 %v38
    %72 = vmatprep.subr.mxu0 %v41
    %73 = vmatpush1.msra.mxu0 %v40
    %74 = vmatprep.subr.mxu0 %v43
    %75 = vmatpush1.msra.mxu0 %v42
    %76 = vmatprep.subr.mxu0 %v45
    %77 = vmatpush1.msra.mxu0 %v44
    %78 = vmatprep.subr.mxu0 %v47
    %79 = vmatpush1.msra.mxu0 %v46
    %80 = vmatprep.subr.mxu0 %v49
    %81 = vmatpush1.msra.mxu0 %v48
    %82 = vmatprep.subr.mxu0 %v51
    %83 = vmatpush1.msra.mxu0 %v50
    %84 = vmatprep.subr.mxu0 %v53
    %85 = vmatpush1.msra.mxu0 %v52
    %86 = vmatprep.subr.mxu0 0.0
    %87 = vmatpush1.msra.mxu0 0.0
    %88 = vmatprep.subr.mxu0 0.0
    %89 = vmatpush1.msra.mxu0 0.0
    %90 = vmatprep.subr.mxu0 0.0
    %91 = vmatpush1.msra.mxu0 0.0
    %92 = vmatprep.subr.mxu0 0.0
    %93 = vmatpush1.msra.mxu0 0.0
    %94 = vmatprep.subr.mxu0 0.0
    %95 = vmatpush1.msra.mxu0 0.0
    %96 = vmatprep.subr.mxu0 0.0
    %97 = vmatpush1.msra.mxu0 0.0
    %98 = vmatprep.subr.mxu0 0.0
    %99 = vmatpush1.msra.mxu0 0.0
    %100 = vmatprep.subr.mxu0 0.0
    %101 = vmatpush1.msra.mxu0 0.0
    %102 = vmatprep.subr.mxu0 0.0
    %103 = vmatpush1.msra.mxu0 0.0
    %104 = vmatprep.subr.mxu0 0.0
    %105 = vmatpush1.msra.mxu0 0.0
    %106 = vmatprep.subr.mxu0 0.0
    %107 = vmatpush1.msra.mxu0 0.0
    %108 = vmatprep.subr.mxu0 0.0
    %109 = vmatpush1.msra.mxu0 0.0
    %110 = vmatprep.subr.mxu0 0.0
    %111 = vmatpush1.msra.mxu0 0.0
    %112 = vmatprep.subr.mxu0 0.0
    %113 = vmatpush1.msra.mxu0 0.0
    %114 = vmatprep.subr.mxu0 0.0
    %115 = vmatpush1.msra.mxu0 0.0
    %116 = vmatprep.subr.mxu0 0.0
    %117 = vmatpush1.msra.mxu0 0.0
    %118 = vmatprep.mubr.f32.mxu0 0.0
    %119 = vmatmul.mubr.f32.gmra.mrb[0].mxu0 0.0
    %v120 = vpop.f32.mrb[0].mxu0
    %v121 = vadd.f32 0.0, %v120
    %v122 = vpop.f32.mrb[0].mxu0
    %v123 = vadd.f32 0.0, %v122
    %124 = vdwg.mxu0
    %v125 = vadd.f32 %v19, %v121
    %v126 = vxor.u32 %v125, 2147483648
    %v127 = vmul.f32 %v126, 1.442695
    %v128 = vpow.pop %v127
    %v129 = vadd.f32 %v128, 1.0
    %v130 = vrcp.pop %v129
    %v131 = vmul.f32 1.0, %v130
    %v133 = vlaneseq
    %v134 = vshrl.u32 %v133, 7
    %v135 = vsub.s32 0, %v134
    %v136 = vrot.slane %v18, %v135
    %v138 = vadd.f32 %v123, %v136
    %v139 = vmul.f32 %v131, %v138
    %v140 = vadd.f32 %v20, %v139
    %v141 = vtanh.pop %v140
    %143 = vset.pattern.permute.xlu0 0
    %144 = vperm.xlu0 %143, %v21
    %v145 = vpop.permute.xlu0 %144
    %v147 = vmul.f32 %v145, %v141
    %v148 = vsub.f32 1.0, %v21
    %150 = vset.pattern.permute.xlu0 0
    %151 = vperm.xlu0 %150, %v148
    %v152 = vpop.permute.xlu0 %151
    %v154 = vmul.f32 %v152, 0.0
    %v155 = vadd.f32 %v147, %v154
    %s156 = scalar_lea.vmem %s0, 16
    %v157 = vld [vmem:[%s156] sm:$0xff]
    %v158 = vld [vmem:[%s156 + $0x8] sm:$0xff]
    %s159 = scalar_lea.vmem %s1, 8
    %v160 = vld [vmem:[%s159] sm:$0xff]
    %161 = vmatprep.subr.mxu0 %v23
    %162 = vmatpush1.msra.mxu0 %v22
    %163 = vmatprep.subr.mxu0 %v25
    %164 = vmatpush1.msra.mxu0 %v24
    %165 = vmatprep.subr.mxu0 %v27
    %166 = vmatpush1.msra.mxu0 %v26
    %167 = vmatprep.subr.mxu0 %v29
    %168 = vmatpush1.msra.mxu0 %v28
    %169 = vmatprep.subr.mxu0 %v31
    %170 = vmatpush1.msra.mxu0 %v30
    %171 = vmatprep.subr.mxu0 %v33
    %172 = vmatpush1.msra.mxu0 %v32
    %173 = vmatprep.subr.mxu0 %v35
    %174 = vmatpush1.msra.mxu0 %v34
    %175 = vmatprep.subr.mxu0 %v37
    %176 = vmatpush1.msra.mxu0 %v36
    %177 = vmatprep.subr.mxu0 %v39
    %178 = vmatpush1.msra.mxu0 %v38
    %179 = vmatprep.subr.mxu0 %v41
    %180 = vmatpush1.msra.mxu0 %v40
    %181 = vmatprep.subr.mxu0 %v43
    %182 = vmatpush1.msra.mxu0 %v42
    %183 = vmatprep.subr.mxu0 %v45
    %184 = vmatpush1.msra.mxu0 %v44
    %185 = vmatprep.subr.mxu0 %v47
    %186 = vmatpush1.msra.mxu0 %v46
    %187 = vmatprep.subr.mxu0 %v49
    %188 = vmatpush1.msra.mxu0 %v48
    %189 = vmatprep.subr.mxu0 %v51
    %190 = vmatpush1.msra.mxu0 %v50
    %191 = vmatprep.subr.mxu0 %v53
    %192 = vmatpush1.msra.mxu0 %v52
    %193 = vmatprep.subr.mxu0 0.0
    %194 = vmatpush1.msra.mxu0 0.0
    %195 = vmatprep.subr.mxu0 0.0
    %196 = vmatpush1.msra.mxu0 0.0
    %197 = vmatprep.subr.mxu0 0.0
    %198 = vmatpush1.msra.mxu0 0.0
    %199 = vmatprep.subr.mxu0 0.0
    %200 = vmatpush1.msra.mxu0 0.0
    %201 = vmatprep.subr.mxu0 0.0
    %202 = vmatpush1.msra.mxu0 0.0
    %203 = vmatprep.subr.mxu0 0.0
    %204 = vmatpush1.msra.mxu0 0.0
    %205 = vmatprep.subr.mxu0 0.0
    %206 = vmatpush1.msra.mxu0 0.0
    %207 = vmatprep.subr.mxu0 0.0
    %208 = vmatpush1.msra.mxu0 0.0
    %209 = vmatprep.subr.mxu0 0.0
    %210 = vmatpush1.msra.mxu0 0.0
    %211 = vmatprep.subr.mxu0 0.0
    %212 = vmatpush1.msra.mxu0 0.0
    %213 = vmatprep.subr.mxu0 0.0
    %214 = vmatpush1.msra.mxu0 0.0
    %215 = vmatprep.subr.mxu0 0.0
    %216 = vmatpush1.msra.mxu0 0.0
    %217 = vmatprep.subr.mxu0 0.0
    %218 = vmatpush1.msra.mxu0 0.0
    %219 = vmatprep.subr.mxu0 0.0
    %220 = vmatpush1.msra.mxu0 0.0
    %221 = vmatprep.subr.mxu0 0.0
    %222 = vmatpush1.msra.mxu0 0.0
    %223 = vmatprep.subr.mxu0 0.0
    %224 = vmatpush1.msra.mxu0 0.0
    %225 = vmatprep.mubr.f32.mxu0 0.0
    %226 = vmatmul.mubr.f32.gmra.mrb[0].mxu0 %v155
    %v227 = vpop.f32.mrb[0].mxu0
    %v228 = vadd.f32 0.0, %v227
    %v229 = vpop.f32.mrb[0].mxu0
    %v230 = vadd.f32 0.0, %v229
    %231 = vdwg.mxu0
    %v232 = vadd.f32 %v157, %v228
    %v233 = vxor.u32 %v232, 2147483648
    %v234 = vmul.f32 %v233, 1.442695
    %v235 = vpow.pop %v234
    %v236 = vadd.f32 %v235, 1.0
    %v237 = vrcp.pop %v236
    %v238 = vmul.f32 1.0, %v237
    %v239 = vadd.f32 %v230, %v136
    %v240 = vmul.f32 %v238, %v239
    %v241 = vadd.f32 %v158, %v240
    %v242 = vtanh.pop %v241
    %244 = vset.pattern.permute.xlu0 0
    %245 = vperm.xlu0 %244, %v160
    %v246 = vpop.permute.xlu0 %245
    %v248 = vmul.f32 %v246, %v242
    %v249 = vsub.f32 1.0, %v160
    %251 = vset.pattern.permute.xlu0 0
    %252 = vperm.xlu0 %251, %v249
    %v253 = vpop.permute.xlu0 %252
    %v255 = vmul.f32 %v253, %v155
    %v256 = vadd.f32 %v248, %v255
    %s257 = scalar_lea.vmem %s0, 32
    %v258 = vld [vmem:[%s257] sm:$0xff]
    %v259 = vld [vmem:[%s257 + $0x8] sm:$0xff]
    %s260 = scalar_lea.vmem %s1, 16
    %v261 = vld [vmem:[%s260] sm:$0xff]
    %262 = vmatprep.subr.mxu0 %v23
    %263 = vmatpush1.msra.mxu0 %v22
    %264 = vmatprep.subr.mxu0 %v25
    %265 = vmatpush1.msra.mxu0 %v24
    %266 = vmatprep.subr.mxu0 %v27
    %267 = vmatpush1.msra.mxu0 %v26
    %268 = vmatprep.subr.mxu0 %v29
    %269 = vmatpush1.msra.mxu0 %v28
    %270 = vmatprep.subr.mxu0 %v31
    %271 = vmatpush1.msra.mxu0 %v30
    %272 = vmatprep.subr.mxu0 %v33
    %273 = vmatpush1.msra.mxu0 %v32
    %274 = vmatprep.subr.mxu0 %v35
    %275 = vmatpush1.msra.mxu0 %v34
    %276 = vmatprep.subr.mxu0 %v37
    %277 = vmatpush1.msra.mxu0 %v36
    %278 = vmatprep.subr.mxu0 %v39
    %279 = vmatpush1.msra.mxu0 %v38
    %280 = vmatprep.subr.mxu0 %v41
    %281 = vmatpush1.msra.mxu0 %v40
    %282 = vmatprep.subr.mxu0 %v43
    %283 = vmatpush1.msra.mxu0 %v42
    %284 = vmatprep.subr.mxu0 %v45
    %285 = vmatpush1.msra.mxu0 %v44
    %286 = vmatprep.subr.mxu0 %v47
    %287 = vmatpush1.msra.mxu0 %v46
    %288 = vmatprep.subr.mxu0 %v49
    %289 = vmatpush1.msra.mxu0 %v48
    %290 = vmatprep.subr.mxu0 %v51
    %291 = vmatpush1.msra.mxu0 %v50
    %292 = vmatprep.subr.mxu0 %v53
    %293 = vmatpush1.msra.mxu0 %v52
    %294 = vmatprep.subr.mxu0 0.0
    %295 = vmatpush1.msra.mxu0 0.0
    %296 = vmatprep.subr.mxu0 0.0
    %297 = vmatpush1.msra.mxu0 0.0
    %298 = vmatprep.subr.mxu0 0.0
    %299 = vmatpush1.msra.mxu0 0.0
    %300 = vmatprep.subr.mxu0 0.0
    %301 = vmatpush1.msra.mxu0 0.0
    %302 = vmatprep.subr.mxu0 0.0
    %303 = vmatpush1.msra.mxu0 0.0
    %304 = vmatprep.subr.mxu0 0.0
    %305 = vmatpush1.msra.mxu0 0.0
    %306 = vmatprep.subr.mxu0 0.0
    %307 = vmatpush1.msra.mxu0 0.0
    %308 = vmatprep.subr.mxu0 0.0
    %309 = vmatpush1.msra.mxu0 0.0
    %310 = vmatprep.subr.mxu0 0.0
    %311 = vmatpush1.msra.mxu0 0.0
    %312 = vmatprep.subr.mxu0 0.0
    %313 = vmatpush1.msra.mxu0 0.0
    %314 = vmatprep.subr.mxu0 0.0
    %315 = vmatpush1.msra.mxu0 0.0
    %316 = vmatprep.subr.mxu0 0.0
    %317 = vmatpush1.msra.mxu0 0.0
    %318 = vmatprep.subr.mxu0 0.0
    %319 = vmatpush1.msra.mxu0 0.0
    %320 = vmatprep.subr.mxu0 0.0
    %321 = vmatpush1.msra.mxu0 0.0
    %322 = vmatprep.subr.mxu0 0.0
    %323 = vmatpush1.msra.mxu0 0.0
    %324 = vmatprep.subr.mxu0 0.0
    %325 = vmatpush1.msra.mxu0 0.0
    %326 = vmatprep.mubr.f32.mxu0 0.0
    %327 = vmatmul.mubr.f32.gmra.mrb[0].mxu0 %v256
    %v328 = vpop.f32.mrb[0].mxu0
    %v329 = vadd.f32 0.0, %v328
    %v330 = vpop.f32.mrb[0].mxu0
    %v331 = vadd.f32 0.0, %v330
    %332 = vdwg.mxu0
    %v333 = vadd.f32 %v258, %v329
    %v334 = vxor.u32 %v333, 2147483648
    %v335 = vmul.f32 %v334, 1.442695
    %v336 = vpow.pop %v335
    %v337 = vadd.f32 %v336, 1.0
    %v338 = vrcp.pop %v337
    %v339 = vmul.f32 1.0, %v338
    %v340 = vadd.f32 %v331, %v136
    %v341 = vmul.f32 %v339, %v340
    %v342 = vadd.f32 %v259, %v341
    %v343 = vtanh.pop %v342
    %345 = vset.pattern.permute.xlu0 0
    %346 = vperm.xlu0 %345, %v261
    %v347 = vpop.permute.xlu0 %346
    %v349 = vmul.f32 %v347, %v343
    %v350 = vsub.f32 1.0, %v261
    %352 = vset.pattern.permute.xlu0 0
    %353 = vperm.xlu0 %352, %v350
    %v354 = vpop.permute.xlu0 %353
    %v356 = vmul.f32 %v354, %v256
    %v357 = vadd.f32 %v349, %v356
    %s358 = scalar_lea.vmem %s0, 48
    %v359 = vld [vmem:[%s358] sm:$0xff]
    %v360 = vld [vmem:[%s358 + $0x8] sm:$0xff]
    %s361 = scalar_lea.vmem %s1, 24
    %v362 = vld [vmem:[%s361] sm:$0xff]
    %363 = vmatprep.subr.mxu0 %v23
    %364 = vmatpush1.msra.mxu0 %v22
    %365 = vmatprep.subr.mxu0 %v25
    %366 = vmatpush1.msra.mxu0 %v24
    %367 = vmatprep.subr.mxu0 %v27
    %368 = vmatpush1.msra.mxu0 %v26
    %369 = vmatprep.subr.mxu0 %v29
    %370 = vmatpush1.msra.mxu0 %v28
    %371 = vmatprep.subr.mxu0 %v31
    %372 = vmatpush1.msra.mxu0 %v30
    %373 = vmatprep.subr.mxu0 %v33
    %374 = vmatpush1.msra.mxu0 %v32
    %375 = vmatprep.subr.mxu0 %v35
    %376 = vmatpush1.msra.mxu0 %v34
    %377 = vmatprep.subr.mxu0 %v37
    %378 = vmatpush1.msra.mxu0 %v36
    %379 = vmatprep.subr.mxu0 %v39
    %380 = vmatpush1.msra.mxu0 %v38
    %381 = vmatprep.subr.mxu0 %v41
    %382 = vmatpush1.msra.mxu0 %v40
    %383 = vmatprep.subr.mxu0 %v43
    %384 = vmatpush1.msra.mxu0 %v42
    %385 = vmatprep.subr.mxu0 %v45
    %386 = vmatpush1.msra.mxu0 %v44
    %387 = vmatprep.subr.mxu0 %v47
    %388 = vmatpush1.msra.mxu0 %v46
    %389 = vmatprep.subr.mxu0 %v49
    %390 = vmatpush1.msra.mxu0 %v48
    %391 = vmatprep.subr.mxu0 %v51
    %392 = vmatpush1.msra.mxu0 %v50
    %393 = vmatprep.subr.mxu0 %v53
    %394 = vmatpush1.msra.mxu0 %v52
    %395 = vmatprep.subr.mxu0 0.0
    %396 = vmatpush1.msra.mxu0 0.0
    %397 = vmatprep.subr.mxu0 0.0
    %398 = vmatpush1.msra.mxu0 0.0
    %399 = vmatprep.subr.mxu0 0.0
    %400 = vmatpush1.msra.mxu0 0.0
    %401 = vmatprep.subr.mxu0 0.0
    %402 = vmatpush1.msra.mxu0 0.0
    %403 = vmatprep.subr.mxu0 0.0
    %404 = vmatpush1.msra.mxu0 0.0
    %405 = vmatprep.subr.mxu0 0.0
    %406 = vmatpush1.msra.mxu0 0.0
    %407 = vmatprep.subr.mxu0 0.0
    %408 = vmatpush1.msra.mxu0 0.0
    %409 = vmatprep.subr.mxu0 0.0
    %410 = vmatpush1.msra.mxu0 0.0
    %411 = vmatprep.subr.mxu0 0.0
    %412 = vmatpush1.msra.mxu0 0.0
    %413 = vmatprep.subr.mxu0 0.0
    %414 = vmatpush1.msra.mxu0 0.0
    %415 = vmatprep.subr.mxu0 0.0
    %416 = vmatpush1.msra.mxu0 0.0
    %417 = vmatprep.subr.mxu0 0.0
    %418 = vmatpush1.msra.mxu0 0.0
    %419 = vmatprep.subr.mxu0 0.0
    %420 = vmatpush1.msra.mxu0 0.0
    %421 = vmatprep.subr.mxu0 0.0
    %422 = vmatpush1.msra.mxu0 0.0
    %423 = vmatprep.subr.mxu0 0.0
    %424 = vmatpush1.msra.mxu0 0.0
    %425 = vmatprep.subr.mxu0 0.0
    %426 = vmatpush1.msra.mxu0 0.0
    %427 = vmatprep.mubr.f32.mxu0 0.0
    %428 = vmatmul.mubr.f32.gmra.mrb[0].mxu0 %v357
    %v429 = vpop.f32.mrb[0].mxu0
    %v430 = vadd.f32 0.0, %v429
    %v431 = vpop.f32.mrb[0].mxu0
    %v432 = vadd.f32 0.0, %v431
    %433 = vdwg.mxu0
    %v434 = vadd.f32 %v359, %v430
    %v435 = vxor.u32 %v434, 2147483648
    %v436 = vmul.f32 %v435, 1.442695
    %v437 = vpow.pop %v436
    %v438 = vadd.f32 %v437, 1.0
    %v439 = vrcp.pop %v438
    %v440 = vmul.f32 1.0, %v439
    %v441 = vadd.f32 %v432, %v136
    %v442 = vmul.f32 %v440, %v441
    %v443 = vadd.f32 %v360, %v442
    %v444 = vtanh.pop %v443
    %446 = vset.pattern.permute.xlu0 0
    %447 = vperm.xlu0 %446, %v362
    %v448 = vpop.permute.xlu0 %447
    %v450 = vmul.f32 %v448, %v444
    %v451 = vsub.f32 1.0, %v362
    %453 = vset.pattern.permute.xlu0 0
    %454 = vperm.xlu0 %453, %v451
    %v455 = vpop.permute.xlu0 %454
    %v457 = vmul.f32 %v455, %v357
    %v458 = vadd.f32 %v450, %v457
    %s459 = scalar_lea.vmem %s0, 64
    %v460 = vld [vmem:[%s459] sm:$0xff]
    %v461 = vld [vmem:[%s459 + $0x8] sm:$0xff]
    %s462 = scalar_lea.vmem %s1, 32
    %v463 = vld [vmem:[%s462] sm:$0xff]
    %464 = vmatprep.subr.mxu0 %v23
    %465 = vmatpush1.msra.mxu0 %v22
    %466 = vmatprep.subr.mxu0 %v25
    %467 = vmatpush1.msra.mxu0 %v24
    %468 = vmatprep.subr.mxu0 %v27
    %469 = vmatpush1.msra.mxu0 %v26
    %470 = vmatprep.subr.mxu0 %v29
    %471 = vmatpush1.msra.mxu0 %v28
    %472 = vmatprep.subr.mxu0 %v31
    %473 = vmatpush1.msra.mxu0 %v30
    %474 = vmatprep.subr.mxu0 %v33
    %475 = vmatpush1.msra.mxu0 %v32
    %476 = vmatprep.subr.mxu0 %v35
    %477 = vmatpush1.msra.mxu0 %v34
    %478 = vmatprep.subr.mxu0 %v37
    %479 = vmatpush1.msra.mxu0 %v36
    %480 = vmatprep.subr.mxu0 %v39
    %481 = vmatpush1.msra.mxu0 %v38
    %482 = vmatprep.subr.mxu0 %v41
    %483 = vmatpush1.msra.mxu0 %v40
    %484 = vmatprep.subr.mxu0 %v43
    %485 = vmatpush1.msra.mxu0 %v42
    %486 = vmatprep.subr.mxu0 %v45
    %487 = vmatpush1.msra.mxu0 %v44
    %488 = vmatprep.subr.mxu0 %v47
    %489 = vmatpush1.msra.mxu0 %v46
    %490 = vmatprep.subr.mxu0 %v49
    %491 = vmatpush1.msra.mxu0 %v48
    %492 = vmatprep.subr.mxu0 %v51
    %493 = vmatpush1.msra.mxu0 %v50
    %494 = vmatprep.subr.mxu0 %v53
    %495 = vmatpush1.msra.mxu0 %v52
    %496 = vmatprep.subr.mxu0 0.0
    %497 = vmatpush1.msra.mxu0 0.0
    %498 = vmatprep.subr.mxu0 0.0
    %499 = vmatpush1.msra.mxu0 0.0
    %500 = vmatprep.subr.mxu0 0.0
    %501 = vmatpush1.msra.mxu0 0.0
    %502 = vmatprep.subr.mxu0 0.0
    %503 = vmatpush1.msra.mxu0 0.0
    %504 = vmatprep.subr.mxu0 0.0
    %505 = vmatpush1.msra.mxu0 0.0
    %506 = vmatprep.subr.mxu0 0.0
    %507 = vmatpush1.msra.mxu0 0.0
    %508 = vmatprep.subr.mxu0 0.0
    %509 = vmatpush1.msra.mxu0 0.0
    %510 = vmatprep.subr.mxu0 0.0
    %511 = vmatpush1.msra.mxu0 0.0
    %512 = vmatprep.subr.mxu0 0.0
    %513 = vmatpush1.msra.mxu0 0.0
    %514 = vmatprep.subr.mxu0 0.0
    %515 = vmatpush1.msra.mxu0 0.0
    %516 = vmatprep.subr.mxu0 0.0
    %517 = vmatpush1.msra.mxu0 0.0
    %518 = vmatprep.subr.mxu0 0.0
    %519 = vmatpush1.msra.mxu0 0.0
    %520 = vmatprep.subr.mxu0 0.0
    %521 = vmatpush1.msra.mxu0 0.0
    %522 = vmatprep.subr.mxu0 0.0
    %523 = vmatpush1.msra.mxu0 0.0
    %524 = vmatprep.subr.mxu0 0.0
    %525 = vmatpush1.msra.mxu0 0.0
    %526 = vmatprep.subr.mxu0 0.0
    %527 = vmatpush1.msra.mxu0 0.0
    %528 = vmatprep.mubr.f32.mxu0 0.0
    %529 = vmatmul.mubr.f32.gmra.mrb[0].mxu0 %v458
    %v530 = vpop.f32.mrb[0].mxu0
    %v531 = vadd.f32 0.0, %v530
    %v532 = vpop.f32.mrb[0].mxu0
    %v533 = vadd.f32 0.0, %v532
    %534 = vdwg.mxu0
    %v535 = vadd.f32 %v460, %v531
    %v536 = vxor.u32 %v535, 2147483648
    %v537 = vmul.f32 %v536, 1.442695
    %v538 = vpow.pop %v537
    %v539 = vadd.f32 %v538, 1.0
    %v540 = vrcp.pop %v539
    %v541 = vmul.f32 1.0, %v540
    %v542 = vadd.f32 %v533, %v136
    %v543 = vmul.f32 %v541, %v542
    %v544 = vadd.f32 %v461, %v543
    %v545 = vtanh.pop %v544
    %547 = vset.pattern.permute.xlu0 0
    %548 = vperm.xlu0 %547, %v463
    %v549 = vpop.permute.xlu0 %548
    %v551 = vmul.f32 %v549, %v545
    %v552 = vsub.f32 1.0, %v463
    %554 = vset.pattern.permute.xlu0 0
    %555 = vperm.xlu0 %554, %v552
    %v556 = vpop.permute.xlu0 %555
    %v558 = vmul.f32 %v556, %v458
    %v559 = vadd.f32 %v551, %v558
    %s560 = scalar_lea.vmem %s0, 80
    %v561 = vld [vmem:[%s560] sm:$0xff]
    %v562 = vld [vmem:[%s560 + $0x8] sm:$0xff]
    %s563 = scalar_lea.vmem %s1, 40
    %v564 = vld [vmem:[%s563] sm:$0xff]
    %565 = vmatprep.subr.mxu0 %v23
    %566 = vmatpush1.msra.mxu0 %v22
    %567 = vmatprep.subr.mxu0 %v25
    %568 = vmatpush1.msra.mxu0 %v24
    %569 = vmatprep.subr.mxu0 %v27
    %570 = vmatpush1.msra.mxu0 %v26
    %571 = vmatprep.subr.mxu0 %v29
    %572 = vmatpush1.msra.mxu0 %v28
    %573 = vmatprep.subr.mxu0 %v31
    %574 = vmatpush1.msra.mxu0 %v30
    %575 = vmatprep.subr.mxu0 %v33
    %576 = vmatpush1.msra.mxu0 %v32
    %577 = vmatprep.subr.mxu0 %v35
    %578 = vmatpush1.msra.mxu0 %v34
    %579 = vmatprep.subr.mxu0 %v37
    %580 = vmatpush1.msra.mxu0 %v36
    %581 = vmatprep.subr.mxu0 %v39
    %582 = vmatpush1.msra.mxu0 %v38
    %583 = vmatprep.subr.mxu0 %v41
    %584 = vmatpush1.msra.mxu0 %v40
    %585 = vmatprep.subr.mxu0 %v43
    %586 = vmatpush1.msra.mxu0 %v42
    %587 = vmatprep.subr.mxu0 %v45
    %588 = vmatpush1.msra.mxu0 %v44
    %589 = vmatprep.subr.mxu0 %v47
    %590 = vmatpush1.msra.mxu0 %v46
    %591 = vmatprep.subr.mxu0 %v49
    %592 = vmatpush1.msra.mxu0 %v48
    %593 = vmatprep.subr.mxu0 %v51
    %594 = vmatpush1.msra.mxu0 %v50
    %595 = vmatprep.subr.mxu0 %v53
    %596 = vmatpush1.msra.mxu0 %v52
    %597 = vmatprep.subr.mxu0 0.0
    %598 = vmatpush1.msra.mxu0 0.0
    %599 = vmatprep.subr.mxu0 0.0
    %600 = vmatpush1.msra.mxu0 0.0
    %601 = vmatprep.subr.mxu0 0.0
    %602 = vmatpush1.msra.mxu0 0.0
    %603 = vmatprep.subr.mxu0 0.0
    %604 = vmatpush1.msra.mxu0 0.0
    %605 = vmatprep.subr.mxu0 0.0
    %606 = vmatpush1.msra.mxu0 0.0
    %607 = vmatprep.subr.mxu0 0.0
    %608 = vmatpush1.msra.mxu0 0.0
    %609 = vmatprep.subr.mxu0 0.0
    %610 = vmatpush1.msra.mxu0 0.0
    %611 = vmatprep.subr.mxu0 0.0
    %612 = vmatpush1.msra.mxu0 0.0
    %613 = vmatprep.subr.mxu0 0.0
    %614 = vmatpush1.msra.mxu0 0.0
    %615 = vmatprep.subr.mxu0 0.0
    %616 = vmatpush1.msra.mxu0 0.0
    %617 = vmatprep.subr.mxu0 0.0
    %618 = vmatpush1.msra.mxu0 0.0
    %619 = vmatprep.subr.mxu0 0.0
    %620 = vmatpush1.msra.mxu0 0.0
    %621 = vmatprep.subr.mxu0 0.0
    %622 = vmatpush1.msra.mxu0 0.0
    %623 = vmatprep.subr.mxu0 0.0
    %624 = vmatpush1.msra.mxu0 0.0
    %625 = vmatprep.subr.mxu0 0.0
    %626 = vmatpush1.msra.mxu0 0.0
    %627 = vmatprep.subr.mxu0 0.0
    %628 = vmatpush1.msra.mxu0 0.0
    %629 = vmatprep.mubr.f32.mxu0 0.0
    %630 = vmatmul.mubr.f32.gmra.mrb[0].mxu0 %v559
    %v631 = vpop.f32.mrb[0].mxu0
    %v632 = vadd.f32 0.0, %v631
    %v633 = vpop.f32.mrb[0].mxu0
    %v634 = vadd.f32 0.0, %v633
    %635 = vdwg.mxu0
    %v636 = vadd.f32 %v561, %v632
    %v637 = vxor.u32 %v636, 2147483648
    %v638 = vmul.f32 %v637, 1.442695
    %v639 = vpow.pop %v638
    %v640 = vadd.f32 %v639, 1.0
    %v641 = vrcp.pop %v640
    %v642 = vmul.f32 1.0, %v641
    %v643 = vadd.f32 %v634, %v136
    %v644 = vmul.f32 %v642, %v643
    %v645 = vadd.f32 %v562, %v644
    %v646 = vtanh.pop %v645
    %648 = vset.pattern.permute.xlu0 0
    %649 = vperm.xlu0 %648, %v564
    %v650 = vpop.permute.xlu0 %649
    %v652 = vmul.f32 %v650, %v646
    %v653 = vsub.f32 1.0, %v564
    %655 = vset.pattern.permute.xlu0 0
    %656 = vperm.xlu0 %655, %v653
    %v657 = vpop.permute.xlu0 %656
    %v659 = vmul.f32 %v657, %v559
    %v660 = vadd.f32 %v652, %v659
    %s661 = scalar_lea.vmem %s0, 96
    %v662 = vld [vmem:[%s661] sm:$0xff]
    %v663 = vld [vmem:[%s661 + $0x8] sm:$0xff]
    %s664 = scalar_lea.vmem %s1, 48
    %v665 = vld [vmem:[%s664] sm:$0xff]
    %666 = vmatprep.subr.mxu0 %v23
    %667 = vmatpush1.msra.mxu0 %v22
    %668 = vmatprep.subr.mxu0 %v25
    %669 = vmatpush1.msra.mxu0 %v24
    %670 = vmatprep.subr.mxu0 %v27
    %671 = vmatpush1.msra.mxu0 %v26
    %672 = vmatprep.subr.mxu0 %v29
    %673 = vmatpush1.msra.mxu0 %v28
    %674 = vmatprep.subr.mxu0 %v31
    %675 = vmatpush1.msra.mxu0 %v30
    %676 = vmatprep.subr.mxu0 %v33
    %677 = vmatpush1.msra.mxu0 %v32
    %678 = vmatprep.subr.mxu0 %v35
    %679 = vmatpush1.msra.mxu0 %v34
    %680 = vmatprep.subr.mxu0 %v37
    %681 = vmatpush1.msra.mxu0 %v36
    %682 = vmatprep.subr.mxu0 %v39
    %683 = vmatpush1.msra.mxu0 %v38
    %684 = vmatprep.subr.mxu0 %v41
    %685 = vmatpush1.msra.mxu0 %v40
    %686 = vmatprep.subr.mxu0 %v43
    %687 = vmatpush1.msra.mxu0 %v42
    %688 = vmatprep.subr.mxu0 %v45
    %689 = vmatpush1.msra.mxu0 %v44
    %690 = vmatprep.subr.mxu0 %v47
    %691 = vmatpush1.msra.mxu0 %v46
    %692 = vmatprep.subr.mxu0 %v49
    %693 = vmatpush1.msra.mxu0 %v48
    %694 = vmatprep.subr.mxu0 %v51
    %695 = vmatpush1.msra.mxu0 %v50
    %696 = vmatprep.subr.mxu0 %v53
    %697 = vmatpush1.msra.mxu0 %v52
    %698 = vmatprep.subr.mxu0 0.0
    %699 = vmatpush1.msra.mxu0 0.0
    %700 = vmatprep.subr.mxu0 0.0
    %701 = vmatpush1.msra.mxu0 0.0
    %702 = vmatprep.subr.mxu0 0.0
    %703 = vmatpush1.msra.mxu0 0.0
    %704 = vmatprep.subr.mxu0 0.0
    %705 = vmatpush1.msra.mxu0 0.0
    %706 = vmatprep.subr.mxu0 0.0
    %707 = vmatpush1.msra.mxu0 0.0
    %708 = vmatprep.subr.mxu0 0.0
    %709 = vmatpush1.msra.mxu0 0.0
    %710 = vmatprep.subr.mxu0 0.0
    %711 = vmatpush1.msra.mxu0 0.0
    %712 = vmatprep.subr.mxu0 0.0
    %713 = vmatpush1.msra.mxu0 0.0
    %714 = vmatprep.subr.mxu0 0.0
    %715 = vmatpush1.msra.mxu0 0.0
    %716 = vmatprep.subr.mxu0 0.0
    %717 = vmatpush1.msra.mxu0 0.0
    %718 = vmatprep.subr.mxu0 0.0
    %719 = vmatpush1.msra.mxu0 0.0
    %720 = vmatprep.subr.mxu0 0.0
    %721 = vmatpush1.msra.mxu0 0.0
    %722 = vmatprep.subr.mxu0 0.0
    %723 = vmatpush1.msra.mxu0 0.0
    %724 = vmatprep.subr.mxu0 0.0
    %725 = vmatpush1.msra.mxu0 0.0
    %726 = vmatprep.subr.mxu0 0.0
    %727 = vmatpush1.msra.mxu0 0.0
    %728 = vmatprep.subr.mxu0 0.0
    %729 = vmatpush1.msra.mxu0 0.0
    %730 = vmatprep.mubr.f32.mxu0 0.0
    %731 = vmatmul.mubr.f32.gmra.mrb[0].mxu0 %v660
    %v732 = vpop.f32.mrb[0].mxu0
    %v733 = vadd.f32 0.0, %v732
    %v734 = vpop.f32.mrb[0].mxu0
    %v735 = vadd.f32 0.0, %v734
    %736 = vdwg.mxu0
    %v737 = vadd.f32 %v662, %v733
    %v738 = vxor.u32 %v737, 2147483648
    %v739 = vmul.f32 %v738, 1.442695
    %v740 = vpow.pop %v739
    %v741 = vadd.f32 %v740, 1.0
    %v742 = vrcp.pop %v741
    %v743 = vmul.f32 1.0, %v742
    %v744 = vadd.f32 %v735, %v136
    %v745 = vmul.f32 %v743, %v744
    %v746 = vadd.f32 %v663, %v745
    %v747 = vtanh.pop %v746
    %749 = vset.pattern.permute.xlu0 0
    %750 = vperm.xlu0 %749, %v665
    %v751 = vpop.permute.xlu0 %750
    %v753 = vmul.f32 %v751, %v747
    %v754 = vsub.f32 1.0, %v665
    %756 = vset.pattern.permute.xlu0 0
    %757 = vperm.xlu0 %756, %v754
    %v758 = vpop.permute.xlu0 %757
    %v760 = vmul.f32 %v758, %v660
    %v761 = vadd.f32 %v753, %v760
    %s762 = scalar_lea.vmem %s0, 112
    %v763 = vld [vmem:[%s762] sm:$0xff]
    %v764 = vld [vmem:[%s762 + $0x8] sm:$0xff]
    %s765 = scalar_lea.vmem %s1, 56
    %v766 = vld [vmem:[%s765] sm:$0xff]
    %767 = vmatprep.subr.mxu0 %v23
    %768 = vmatpush1.msra.mxu0 %v22
    %769 = vmatprep.subr.mxu0 %v25
    %770 = vmatpush1.msra.mxu0 %v24
    %771 = vmatprep.subr.mxu0 %v27
    %772 = vmatpush1.msra.mxu0 %v26
    %773 = vmatprep.subr.mxu0 %v29
    %774 = vmatpush1.msra.mxu0 %v28
    %775 = vmatprep.subr.mxu0 %v31
    %776 = vmatpush1.msra.mxu0 %v30
    %777 = vmatprep.subr.mxu0 %v33
    %778 = vmatpush1.msra.mxu0 %v32
    %779 = vmatprep.subr.mxu0 %v35
    %780 = vmatpush1.msra.mxu0 %v34
    %781 = vmatprep.subr.mxu0 %v37
    %782 = vmatpush1.msra.mxu0 %v36
    %783 = vmatprep.subr.mxu0 %v39
    %784 = vmatpush1.msra.mxu0 %v38
    %785 = vmatprep.subr.mxu0 %v41
    %786 = vmatpush1.msra.mxu0 %v40
    %787 = vmatprep.subr.mxu0 %v43
    %788 = vmatpush1.msra.mxu0 %v42
    %789 = vmatprep.subr.mxu0 %v45
    %790 = vmatpush1.msra.mxu0 %v44
    %791 = vmatprep.subr.mxu0 %v47
    %792 = vmatpush1.msra.mxu0 %v46
    %793 = vmatprep.subr.mxu0 %v49
    %794 = vmatpush1.msra.mxu0 %v48
    %795 = vmatprep.subr.mxu0 %v51
    %796 = vmatpush1.msra.mxu0 %v50
    %797 = vmatprep.subr.mxu0 %v53
    %798 = vmatpush1.msra.mxu0 %v52
    %799 = vmatprep.subr.mxu0 0.0
    %800 = vmatpush1.msra.mxu0 0.0
    %801 = vmatprep.subr.mxu0 0.0
    %802 = vmatpush1.msra.mxu0 0.0
    %803 = vmatprep.subr.mxu0 0.0
    %804 = vmatpush1.msra.mxu0 0.0
    %805 = vmatprep.subr.mxu0 0.0
    %806 = vmatpush1.msra.mxu0 0.0
    %807 = vmatprep.subr.mxu0 0.0
    %808 = vmatpush1.msra.mxu0 0.0
    %809 = vmatprep.subr.mxu0 0.0
    %810 = vmatpush1.msra.mxu0 0.0
    %811 = vmatprep.subr.mxu0 0.0
    %812 = vmatpush1.msra.mxu0 0.0
    %813 = vmatprep.subr.mxu0 0.0
    %814 = vmatpush1.msra.mxu0 0.0
    %815 = vmatprep.subr.mxu0 0.0
    %816 = vmatpush1.msra.mxu0 0.0
    %817 = vmatprep.subr.mxu0 0.0
    %818 = vmatpush1.msra.mxu0 0.0
    %819 = vmatprep.subr.mxu0 0.0
    %820 = vmatpush1.msra.mxu0 0.0
    %821 = vmatprep.subr.mxu0 0.0
    %822 = vmatpush1.msra.mxu0 0.0
    %823 = vmatprep.subr.mxu0 0.0
    %824 = vmatpush1.msra.mxu0 0.0
    %825 = vmatprep.subr.mxu0 0.0
    %826 = vmatpush1.msra.mxu0 0.0
    %827 = vmatprep.subr.mxu0 0.0
    %828 = vmatpush1.msra.mxu0 0.0
    %829 = vmatprep.subr.mxu0 0.0
    %830 = vmatpush1.msra.mxu0 0.0
    %831 = vmatprep.mubr.f32.mxu0 0.0
    %832 = vmatmul.mubr.f32.gmra.mrb[0].mxu0 %v761
    %v833 = vpop.f32.mrb[0].mxu0
    %v834 = vadd.f32 0.0, %v833
    %v835 = vpop.f32.mrb[0].mxu0
    %v836 = vadd.f32 0.0, %v835
    %837 = vdwg.mxu0
    %v838 = vadd.f32 %v763, %v834
    %v839 = vxor.u32 %v838, 2147483648
    %v840 = vmul.f32 %v839, 1.442695
    %v841 = vpow.pop %v840
    %v842 = vadd.f32 %v841, 1.0
    %v843 = vrcp.pop %v842
    %v844 = vmul.f32 1.0, %v843
    %v845 = vadd.f32 %v836, %v136
    %v846 = vmul.f32 %v844, %v845
    %v847 = vadd.f32 %v764, %v846
    %v848 = vtanh.pop %v847
    %850 = vset.pattern.permute.xlu0 0
    %851 = vperm.xlu0 %850, %v766
    %v852 = vpop.permute.xlu0 %851
    %v854 = vmul.f32 %v852, %v848
    %v855 = vsub.f32 1.0, %v766
    %857 = vset.pattern.permute.xlu0 0
    %858 = vperm.xlu0 %857, %v855
    %v859 = vpop.permute.xlu0 %858
    %v861 = vmul.f32 %v859, %v761
    %v862 = vadd.f32 %v854, %v861
    %863 = vst [vmem:[#allocation2] sm:$0xff] %v862
    // Predicated region
    $region18: #{attention_gru.1} parent=1 // pred_check
      _
    $region19: #{attention_gru.1} parent=1 // pred_check_branch
      %865 = sbr.rel (0) target = $region21
    $region20: #{attention_gru.1} parent=1 // pred_region
      %s867 = ssub.s32 128, 128
      %868 = vsyncadd [#allocation3], %s867
      %s870 = sshll.u32 [#allocation2], 4
      %s871 = int_to_ptr.vmem [resolvable:$true] %s870
      %873 = dma.vmem_to_hbm [thread:$0]  %s871, 128, %s4, [#allocation3]
    $region21: #{attention_gru.1} parent=1 // pred_fallthru
      _
    // Predicated region
    $region22: #{attention_gru.1} parent=1 // pred_check
      _
    $region23: #{attention_gru.1} parent=1 // pred_check_branch
      %875 = sbr.rel (0) target = $region25
    $region24: #{attention_gru.1} parent=1 // pred_region
      %876 = dma.done [#allocation3], 128
    $region25: #{attention_gru.1} parent=1 // pred_fallthru
      _
    %877 = vsyncpa [#allocation3], 1

</llo_original>
